<compile_context>
chip_gen: v5e
topology: v5e:2x2
jax: 0.10.0
libtpu: 0.0.40
codegen_flags: <defaults>
</compile_context>

<pallas_src>
import numpy as np
import jax
import jax.numpy as jnp
from jax import lax
from jax.experimental import pallas as pl
from jax.experimental.pallas import tpu as pltpu

MARGIN = 0.5
ANCHOR_IDX = 0
LANE = 128
ANCHOR_BLOCK = 8          # anchors folded per grid step (one sublane group)


# ---------------------------------------------------------------------------
# Pallas kernel: AB anchors per step -> distances + masked triplet partials
# ---------------------------------------------------------------------------
def _make_triplet_kernel(margin, w, nw, ab, nw_pad, anchor_idx):
    margin = float(margin)

    def kernel(lblb_ref, lblf_ref, emb_ref, xt_ref,
               dist_ref, lsum_ref, hcnt_ref):
        g = pl.program_id(0)

        xb = emb_ref[...]                              # (AB, W, X) this step's samples
        a = xb[:, anchor_idx, :]                       # (AB, X)    anchors (derived in-kernel)
        xt = xt_ref[...]                               # (X, NW_pad) all samples, lane-dense

        # --- full anchor->sample squared distances (pure VPU, computed once) -
        diff = xt[None, :, :] - a[:, :, None]          # (AB, X, NW_pad)
        d = jnp.sum(diff * diff, axis=1)               # (AB, NW_pad)
        dist_ref[...] = d                              # lane-dense 8-sublane store

        # --- positive-candidate distances on just this anchor's W-row block --
        diffp = xb - a[:, None, :]                     # (AB, W, X)
        d_pos = jnp.sum(diffp * diffp, axis=2,
                        keepdims=True)                 # (AB, W, 1)

        # --- masks (rank-1 structure, rebuilt from tiny label vectors) -------
        # rowmask[n, i]: sample i of anchor n's block is a positive
        rowmask = jnp.where(lblb_ref[...] == 1.0, 1.0, 0.0)       # (AB, W)

        # colmask[n, j]: all real columns except anchor n's own positives and
        # its anchor slot; lane padding (j >= NW) masked to zero.
        j_lane = lax.broadcasted_iota(jnp.int32, (ab, nw_pad), 1)
        n_sub = lax.broadcasted_iota(jnp.int32, (ab, nw_pad), 0)
        start = (g * ab + n_sub) * w                               # per-anchor block start
        in_blk = (j_lane >= start) & (j_lane < start + w)
        is_pos = in_blk & (lblf_ref[...] == 1.0)                   # (AB, NW_pad)
        colmask = jnp.where((j_lane < nw)
                            & (j_lane != start + anchor_idx)
                            & jnp.logical_not(is_pos), 1.0, 0.0)   # (AB, NW_pad)

        # --- triplets restricted to the W positive rows of each anchor -------
        # tl[n,i,j] = rm[n,i] * cm[n,j] * relu(d_pos[n,i] - d[n,j] + margin)
        # (masks in {0,1}, so mask*relu(ln) == relu(ln*mask) like the reference)
        ln = d_pos - d[:, None, :] + margin            # (AB, W, NW_pad)
        tl = (rowmask[:, :, None] * colmask[:, None, :]
              * jnp.maximum(ln, 0.0))

        # per-anchor lane-dense partial sums; final scalar reduce + divide
        # happens in the JAX wrapper.
        lsum_ref[...] = jnp.sum(tl, axis=1)                        # (AB, NW_pad)
        hcnt_ref[...] = jnp.sum((tl > 1e-16).astype(jnp.float32), axis=1)

    return kernel


def label_triplet_loss_forward(pred_embeddings, pos_neg_label, margin=MARGIN):
    emb = jnp.asarray(pred_embeddings, jnp.float32)
    N, W, X = emb.shape
    NW = N * W
    NW_pad = ((NW + LANE - 1) // LANE) * LANE
    AB = ANCHOR_BLOCK
    N_pad = ((N + AB - 1) // AB) * AB
    G = N_pad // AB          # NOTE: v7x needs N >= 16 for both TCs to get work

    # ---- wrapper-side layout plumbing (tiny, lane-dense) --------------------
    emb_pad = jnp.pad(emb, ((0, N_pad - N), (0, 0), (0, 0)))      # (N_pad, W, X)
    label = jnp.asarray(pos_neg_label, jnp.float32)
    lbl_blk = jnp.pad(label, ((0, N_pad - N), (0, 0)))            # (N_pad, W)
    lbl_flat = jnp.pad(label.reshape(1, NW),
                       ((0, 0), (0, NW_pad - NW)))                # (1, NW_pad)
    xt_pad = jnp.pad(emb.reshape(NW, X),
                     ((0, NW_pad - NW), (0, 0))).T                # (X, NW_pad)

    kernel = _make_triplet_kernel(margin, W, NW, AB, NW_pad, ANCHOR_IDX)

    # explicit scoped-VMEM budget with headroom (v7x: 64 MiB physical;
    # v5e: 16 MiB scoped default)
    bytes_est = 4 * (
        2 * X * NW_pad            # samples^T (worst case double-buffered)
        + 2 * AB * W * X          # per-step embedding block
        + 2 * (AB * W + NW_pad)   # label blocks
        + 2 * 3 * AB * NW_pad     # three lane-dense outputs
        + AB * X * NW_pad         # diff intermediate
        + 2 * AB * W * NW_pad     # ln / tl intermediates
    )
    vmem_bytes = int(min(48 * 2**20, max(16 * 2**20, 2 * bytes_est)))

    dist_p, lsum, hcnt = pl.pallas_call(
        kernel,
        grid=(G,),
        in_specs=[
            pl.BlockSpec((AB, W), lambda g: (g, 0)),          # per-step labels
            pl.BlockSpec((1, NW_pad), lambda g: (0, 0)),      # flat labels (grid-invariant)
            pl.BlockSpec((AB, W, X), lambda g: (g, 0, 0)),    # per-step samples (+anchors)
            pl.BlockSpec((X, NW_pad), lambda g: (0, 0)),      # samples^T (grid-invariant)
        ],
        out_specs=(
            pl.BlockSpec((AB, NW_pad), lambda g: (g, 0)),     # dist rows
            pl.BlockSpec((AB, NW_pad), lambda g: (g, 0)),     # loss partial sums
            pl.BlockSpec((AB, NW_pad), lambda g: (g, 0)),     # hard-triplet partial counts
        ),
        out_shape=(
            jax.ShapeDtypeStruct((N_pad, NW_pad), jnp.float32),
            jax.ShapeDtypeStruct((N_pad, NW_pad), jnp.float32),
            jax.ShapeDtypeStruct((N_pad, NW_pad), jnp.float32),
        ),
        compiler_params=pltpu.CompilerParams(
            dimension_semantics=("parallel",),
            vmem_limit_bytes=vmem_bytes),
    )(lbl_blk, lbl_flat, emb_pad, xt_pad)

    dist = dist_p[:N, :NW]                                    # (N, NW)
    # padded anchors / padded lanes contribute exactly zero to both sums
    triplet_loss = jnp.sum(lsum) / (jnp.sum(hcnt) + 1e-16)

    label_np = np.asarray(pos_neg_label, dtype=np.float32)
    pos2neg = _pos2neg_dists(np.asarray(dist), label_np, ANCHOR_IDX)
    return triplet_loss, pos2neg, dist


# ---------------------------------------------------------------------------
# Host-side diagnostics (mirrors the reference, which itself runs on CPU/numpy)
# ---------------------------------------------------------------------------
def _pos2neg_dists(anchor2sample_dist, pos_neg_label, anchor_ref_idx=0):
    # TODO(synk): data-dependent variable-size gathers / argmin unravel_index;
    # kept on host numpy exactly like the reference (.detach().cpu().numpy()).
    N, W = pos_neg_label.shape
    d = np.asarray(anchor2sample_dist)
    rows = []
    for n in range(N):
        pos_labels = np.zeros(N * W)
        pos_labels[n * W + np.where(pos_neg_label[n, :] == 1.0)[0]] = 1.0
        anchor2pos = d[n][pos_labels == 1.0]
        max_anchor2pos = anchor2pos.max()
        pos_labels[n * W + anchor_ref_idx] = 1.0
        anchor2neg = d[n][pos_labels != 1.0]
        min_anchor2neg = anchor2neg.min()
        neg2pos = anchor2neg[:, None] - anchor2pos[None, :]
        min_neg2pos = neg2pos.min()
        xx = np.unravel_index(neg2pos.argmin(), neg2pos.shape)
        accu_ratio = float(np.count_nonzero(neg2pos > 0)) / float(neg2pos.size)
        avg_neg2pos = np.average(neg2pos)
        rows.append((max_anchor2pos, min_anchor2neg, min_neg2pos, avg_neg2pos,
                     xx[0], xx[1], accu_ratio))
    rows = np.asarray(rows)
    return {'max_anchor2pos': rows[:, 0], 'min_anchor2neg': rows[:, 1],
            'min_neg2pos': rows[:, 2], 'avg_neg2pos': rows[:, 3],
            'neg_idx': rows[:, 4], 'pos_idx': rows[:, 5],
            'accu_ratio': rows[:, 6]}


# ---------------------------------------------------------------------------
# Pure numpy reference (mirrors the PyTorch forward) -- verification only.
# ---------------------------------------------------------------------------
def _mask_valid_ref(pos_neg_label, anchor_idx=0):
    N, W = pos_neg_label.shape
    output = np.zeros((N, N * W, N * W), dtype=np.float64)
    for n in range(N):
        mask = pos_neg_label[n, :]
        if np.any(mask) == 1.0:
            start = n * W
            pos_indices = np.where(mask == 1.0)[0] + start
            for pos_idx in pos_indices:
                output[n, pos_idx, :] = 1.0
                output[n, pos_idx, pos_indices] = 0.0
                output[n, pos_idx, start + anchor_idx] = 0.0
    return output


def _reference_loss(emb, label, margin):
    emb = np.asarray(emb, np.float64)
    N, W, X = emb.shape
    NW = N * W
    anchor = emb[:, ANCHOR_IDX, :]
    xf = emb.reshape(NW, X)
    adb = anchor @ xf.T
    ada = (anchor * anchor).sum(-1)[:, None]
    bdb = (xf * xf).sum(-1)[None, :]
    dist = np.maximum(ada - 2.0 * adb + bdb, 0.0)
    mask = _mask_valid_ref(label, ANCHOR_IDX)
    loss3 = dist[:, :, None] - dist[:, None, :] + margin
    tl = np.maximum(loss3 * mask, 0.0)
    hard = float((tl > 1e-16).sum())
    return tl.sum() / (hard + 1e-16), dist


if __name__ == "__main__":
    key = jax.random.PRNGKey(0)
    k_emb, k_lab = jax.random.split(key)
    N, W, X = 2, 8, 32
    emb = jax.random.normal(k_emb, (N, W, X), dtype=jnp.float32)

    # np.array(...) (not np.asarray) -> writable host copy of the jax array.
    lab = np.array(jax.random.uniform(k_lab, (N, W)) > 0.5, dtype=np.float32)
    lab[:, 0] = 0.0            # anchor slot is never a positive
    lab[:, 1:4] = 1.0          # guarantee >= 2 positives per row
    lab[:, W - 2:] = 0.0       # guarantee negatives per row

    loss, pos2neg, dist = label_triplet_loss_forward(emb, lab, MARGIN)
    loss = jax.block_until_ready(loss)
    dist = jax.block_until_ready(dist)

    ref_loss, ref_dist = _reference_loss(np.asarray(emb), lab, MARGIN)
    assert np.allclose(np.asarray(dist), ref_dist, rtol=1e-4, atol=1e-4), \
        "dist mismatch"
    assert np.allclose(float(loss), ref_loss, rtol=1e-4, atol=1e-4), \
        "loss mismatch"
    _ = pos2neg["min_neg2pos"]

    print("KERNEL_OK")
</pallas_src>

<mosaic_0001>
module attributes {stable_mosaic.version = 11 : i64} {
  func.func @kernel(%arg0: i32, %arg1: memref<8x8xf32, #tpu.memory_space<vmem>>, %arg2: memref<1x128xf32, #tpu.memory_space<vmem>>, %arg3: memref<8x8x32xf32, #tpu.memory_space<vmem>>, %arg4: memref<32x128xf32, #tpu.memory_space<vmem>>, %arg5: memref<8x128xf32, #tpu.memory_space<vmem>>, %arg6: memref<8x128xf32, #tpu.memory_space<vmem>>, %arg7: memref<8x128xf32, #tpu.memory_space<vmem>>) attributes {dimension_semantics = [#tpu.dimension_semantics<parallel>], iteration_bounds = array<i64: 1>, scalar_prefetch = 0 : i64, scratch_operands = 0 : i64, tpu.core_type = #tpu.core_type<tc>, window_params = [{transform_indices = @transform_0, window_bounds = array<i64: 8, 8>}, {pipeline_mode = #tpu.pipeline_mode<synchronous>, transform_indices = @transform_1, window_bounds = array<i64: 1, 128>}, {transform_indices = @transform_2, window_bounds = array<i64: 8, 8, 32>}, {pipeline_mode = #tpu.pipeline_mode<synchronous>, transform_indices = @transform_3, window_bounds = array<i64: 32, 128>}, {transform_indices = @transform_4, window_bounds = array<i64: 8, 128>}, {transform_indices = @transform_5, window_bounds = array<i64: 8, 128>}, {transform_indices = @transform_6, window_bounds = array<i64: 8, 128>}]} {
    %c0 = arith.constant 0 : index
    %c0_0 = arith.constant 0 : index
    %c0_1 = arith.constant 0 : index
    %0 = vector.load %arg3[%c0, %c0_0, %c0_1] : memref<8x8x32xf32, #tpu.memory_space<vmem>>, vector<8x8x32xf32>
    %1 = vector.extract_strided_slice %0 {offsets = [0, 0, 0], sizes = [8, 1, 32], strides = [1, 1, 1]} : vector<8x8x32xf32> to vector<8x1x32xf32>
    %2 = vector.shape_cast %1 : vector<8x1x32xf32> to vector<8x32xf32>
    %c0_2 = arith.constant 0 : index
    %c0_3 = arith.constant 0 : index
    %3 = vector.load %arg4[%c0_2, %c0_3] : memref<32x128xf32, #tpu.memory_space<vmem>>, vector<32x128xf32>
    %4 = vector.shape_cast %3 : vector<32x128xf32> to vector<1x32x128xf32>
    %5 = vector.shape_cast %2 : vector<8x32xf32> to vector<8x32x1xf32>
    %6 = vector.broadcast %4 : vector<1x32x128xf32> to vector<8x32x128xf32>
    %7 = vector.broadcast %5 : vector<8x32x1xf32> to vector<8x32x128xf32>
    %8 = arith.subf %6, %7 : vector<8x32x128xf32>
    %9 = arith.mulf %8, %8 : vector<8x32x128xf32>
    %cst = arith.constant dense<0.000000e+00> : vector<8x128xf32>
    %10 = vector.multi_reduction <add>, %9, %cst [1] : vector<8x32x128xf32> to vector<8x128xf32>
    %c0_4 = arith.constant 0 : index
    %c0_5 = arith.constant 0 : index
    %11 = vector.load %arg5[%c0_4, %c0_5] : memref<8x128xf32, #tpu.memory_space<vmem>>, vector<8x128xf32>
    tpu.vector_store %arg5[%c0_4, %c0_5], %10 {strides = array<i32>} : memref<8x128xf32, #tpu.memory_space<vmem>>, vector<8x128xf32>,
    %12 = vector.shape_cast %2 : vector<8x32xf32> to vector<8x1x32xf32>
    %13 = vector.broadcast %12 : vector<8x1x32xf32> to vector<8x8x32xf32>
    %14 = arith.subf %0, %13 : vector<8x8x32xf32>
    %15 = arith.mulf %14, %14 : vector<8x8x32xf32>
    %cst_6 = arith.constant dense<0.000000e+00> : vector<8x8xf32>
    %16 = vector.multi_reduction <add>, %15, %cst_6 [2] : vector<8x8x32xf32> to vector<8x8xf32>
    %17 = vector.shape_cast %16 : vector<8x8xf32> to vector<8x8x1xf32>
    %c0_7 = arith.constant 0 : index
    %c0_8 = arith.constant 0 : index
    %18 = vector.load %arg1[%c0_7, %c0_8] : memref<8x8xf32, #tpu.memory_space<vmem>>, vector<8x8xf32>
    %cst_9 = arith.constant 1.000000e+00 : f32
    %19 = vector.broadcast %cst_9 : f32 to vector<8x8xf32>
    %20 = arith.cmpf oeq, %18, %19 : vector<8x8xf32>
    %cst_10 = arith.constant 1.000000e+00 : f32
    %cst_11 = arith.constant 0.000000e+00 : f32
    %21 = vector.broadcast %cst_10 : f32 to vector<8x8xf32>
    %22 = vector.broadcast %cst_11 : f32 to vector<8x8xf32>
    %23 = arith.select %20, %21, %22 : vector<8x8xi1>, vector<8x8xf32>
    %24 = tpu.iota {dimensions = array<i32: 1>} : vector<8x128xi32>
    %25 = tpu.iota {dimensions = array<i32: 0>} : vector<8x128xi32>
    %c8_i32 = arith.constant 8 : i32
    %26 = arith.muli %arg0, %c8_i32 : i32
    %27 = vector.broadcast %26 : i32 to vector<8x128xi32>
    %28 = arith.addi %27, %25 : vector<8x128xi32>
    %c8_i32_12 = arith.constant 8 : i32
    %29 = vector.broadcast %c8_i32_12 : i32 to vector<8x128xi32>
    %30 = arith.muli %28, %29 : vector<8x128xi32>
    %31 = arith.cmpi sge, %24, %30 : vector<8x128xi32>
    %c8_i32_13 = arith.constant 8 : i32
    %32 = vector.broadcast %c8_i32_13 : i32 to vector<8x128xi32>
    %33 = arith.addi %30, %32 : vector<8x128xi32>
    %34 = arith.cmpi slt, %24, %33 : vector<8x128xi32>
    %35 = arith.andi %31, %34 : vector<8x128xi1>
    %c0_14 = arith.constant 0 : index
    %c0_15 = arith.constant 0 : index
    %36 = vector.load %arg2[%c0_14, %c0_15] : memref<1x128xf32, #tpu.memory_space<vmem>>, vector<1x128xf32>
    %cst_16 = arith.constant 1.000000e+00 : f32
    %37 = vector.broadcast %cst_16 : f32 to vector<1x128xf32>
    %38 = arith.cmpf oeq, %36, %37 : vector<1x128xf32>
    %39 = vector.broadcast %38 : vector<1x128xi1> to vector<8x128xi1>
    %40 = arith.andi %35, %39 : vector<8x128xi1>
    %c16_i32 = arith.constant 16 : i32
    %41 = vector.broadcast %c16_i32 : i32 to vector<8x128xi32>
    %42 = arith.cmpi slt, %24, %41 : vector<8x128xi32>
    %c0_i32 = arith.constant 0 : i32
    %43 = vector.broadcast %c0_i32 : i32 to vector<8x128xi32>
    %44 = arith.addi %30, %43 : vector<8x128xi32>
    %45 = arith.cmpi ne, %24, %44 : vector<8x128xi32>
    %46 = arith.andi %42, %45 : vector<8x128xi1>
    %cst_17 = arith.constant dense<true> : vector<8x128xi1>
    %47 = arith.xori %40, %cst_17 : vector<8x128xi1>
    %48 = arith.andi %46, %47 : vector<8x128xi1>
    %cst_18 = arith.constant 1.000000e+00 : f32
    %cst_19 = arith.constant 0.000000e+00 : f32
    %49 = vector.broadcast %cst_18 : f32 to vector<8x128xf32>
    %50 = vector.broadcast %cst_19 : f32 to vector<8x128xf32>
    %51 = arith.select %48, %49, %50 : vector<8x128xi1>, vector<8x128xf32>
    %52 = vector.shape_cast %10 : vector<8x128xf32> to vector<8x1x128xf32>
    %53 = vector.broadcast %17 : vector<8x8x1xf32> to vector<8x8x128xf32>
    %54 = vector.broadcast %52 : vector<8x1x128xf32> to vector<8x8x128xf32>
    %55 = arith.subf %53, %54 : vector<8x8x128xf32>
    %cst_20 = arith.constant 5.000000e-01 : f32
    %56 = vector.broadcast %cst_20 : f32 to vector<8x8x128xf32>
    %57 = arith.addf %55, %56 : vector<8x8x128xf32>
    %58 = vector.shape_cast %23 : vector<8x8xf32> to vector<8x8x1xf32>
    %59 = vector.shape_cast %51 : vector<8x128xf32> to vector<8x1x128xf32>
    %60 = vector.broadcast %58 : vector<8x8x1xf32> to vector<8x8x128xf32>
    %61 = vector.broadcast %59 : vector<8x1x128xf32> to vector<8x8x128xf32>
    %62 = arith.mulf %60, %61 : vector<8x8x128xf32>
    %cst_21 = arith.constant 0.000000e+00 : f32
    %63 = vector.broadcast %cst_21 : f32 to vector<8x8x128xf32>
    %64 = arith.maximumf %57, %63 : vector<8x8x128xf32>
    %65 = arith.mulf %62, %64 : vector<8x8x128xf32>
    %cst_22 = arith.constant dense<0.000000e+00> : vector<8x128xf32>
    %66 = vector.multi_reduction <add>, %65, %cst_22 [1] : vector<8x8x128xf32> to vector<8x128xf32>
    %c0_23 = arith.constant 0 : index
    %c0_24 = arith.constant 0 : index
    %67 = vector.load %arg6[%c0_23, %c0_24] : memref<8x128xf32, #tpu.memory_space<vmem>>, vector<8x128xf32>
    tpu.vector_store %arg6[%c0_23, %c0_24], %66 {strides = array<i32>} : memref<8x128xf32, #tpu.memory_space<vmem>>, vector<8x128xf32>,
    %cst_25 = arith.constant 1.000000e-16 : f32
    %68 = vector.broadcast %cst_25 : f32 to vector<8x8x128xf32>
    %69 = arith.cmpf ogt, %65, %68 : vector<8x8x128xf32>
    %70 = arith.extui %69 : vector<8x8x128xi1> to vector<8x8x128xi32>
    %71 = arith.sitofp %70 : vector<8x8x128xi32> to vector<8x8x128xf32>
    %cst_26 = arith.constant dense<0.000000e+00> : vector<8x128xf32>
    %72 = vector.multi_reduction <add>, %71, %cst_26 [1] : vector<8x8x128xf32> to vector<8x128xf32>
    %c0_27 = arith.constant 0 : index
    %c0_28 = arith.constant 0 : index
    %73 = vector.load %arg7[%c0_27, %c0_28] : memref<8x128xf32, #tpu.memory_space<vmem>>, vector<8x128xf32>
    tpu.vector_store %arg7[%c0_27, %c0_28], %72 {strides = array<i32>} : memref<8x128xf32, #tpu.memory_space<vmem>>, vector<8x128xf32>,
    return
  }
  func.func @transform_0(%arg0: i32) -> (i32, i32) {
    %c0_i32 = arith.constant 0 : i32
    %c0_i32_0 = arith.constant 0 : i32
    return %arg0, %c0_i32 : i32, i32
  }
  func.func @transform_1(%arg0: i32) -> (i32, i32) {
    %c0_i32 = arith.constant 0 : i32
    %c0_i32_0 = arith.constant 0 : i32
    %c0_i32_1 = arith.constant 0 : i32
    return %c0_i32, %c0_i32_0 : i32, i32
  }
  func.func @transform_2(%arg0: i32) -> (i32, i32, i32) {
    %c0_i32 = arith.constant 0 : i32
    %c0_i32_0 = arith.constant 0 : i32
    %c0_i32_1 = arith.constant 0 : i32
    return %arg0, %c0_i32, %c0_i32_0 : i32, i32, i32
  }
  func.func @transform_3(%arg0: i32) -> (i32, i32) {
    %c0_i32 = arith.constant 0 : i32
    %c0_i32_0 = arith.constant 0 : i32
    %c0_i32_1 = arith.constant 0 : i32
    return %c0_i32, %c0_i32_0 : i32, i32
  }
  func.func @transform_4(%arg0: i32) -> (i32, i32) {
    %c0_i32 = arith.constant 0 : i32
    %c0_i32_0 = arith.constant 0 : i32
    return %arg0, %c0_i32 : i32, i32
  }
  func.func @transform_5(%arg0: i32) -> (i32, i32) {
    %c0_i32 = arith.constant 0 : i32
    %c0_i32_0 = arith.constant 0 : i32
    return %arg0, %c0_i32 : i32, i32
  }
  func.func @transform_6(%arg0: i32) -> (i32, i32) {
    %c0_i32 = arith.constant 0 : i32
    %c0_i32_0 = arith.constant 0 : i32
    return %arg0, %c0_i32 : i32, i32
  }
}

</mosaic_0001>

<llo_original>
// kernel: tpu_custom_call.1
$region0: #{tpu_custom_call.1}
  #allocation0 [shape = 'u32[]', space=smem, size = 0x4, offset = 0x4, fixed_abs, tag = 'smem constant byte address 0x4 - core index']
  #allocation1 [shape = 'u32[72,128]{1,0:T(1,128)}', space=vmem, size = 0x9000, scoped, tag = 'internal scratch']
  %s0 = inlined_call_operand.hbm [shape: f32[8,8], index: 0, kind: input, shape index: {}]
  %s1 = inlined_call_operand.hbm [shape: f32[1,128], index: 1, kind: input, shape index: {}]
  %s2 = inlined_call_operand.hbm [shape: f32[8,8,32], index: 2, kind: input, shape index: {}]
  %s3 = inlined_call_operand.hbm [shape: f32[32,128], index: 3, kind: input, shape index: {}]
  %s4 = inlined_call_operand.hbm [shape: f32[8,128], index: 4, kind: output, shape index: {0}]
  %s5 = inlined_call_operand.hbm [shape: f32[8,128], index: 5, kind: output, shape index: {1}]
  %s6 = inlined_call_operand.hbm [shape: f32[8,128], index: 6, kind: output, shape index: {2}]
  %7 = xla_tuple %s4, %s5, %s6
  %s8 = sld [smem:[#allocation0]]
  $region58: #{tpu_custom_call.1} parent=0
    _
  %s10 = ssub.s32 1, %s8
  %s11 = scalar_select 0, %s10, %s8
  $region1: #{tpu_custom_call.1} parent=0
    #allocation2 [shape = 'u8[4096]{0}', space=vmem, size = 0x1000, scoped, tag = 'input window, operand 0, single buffered']
    #allocation3 [shape = 's32[1]{0}', space=sflag, size = 0x4, scoped, tag = 'scoped memory for tpu_custom_call.1']
    #allocation4 [shape = 's32[1]{0}', space=sflag, size = 0x4, scoped, tag = 'scoped memory for tpu_custom_call.1']
    #allocation5 [shape = 'u8[512]{0}', space=vmem, size = 0x400, scoped, tag = 'input window, operand 1, single buffered']
    #allocation6 [shape = 's32[1]{0}', space=sflag, size = 0x4, scoped, tag = 'scoped memory for tpu_custom_call.1']
    #allocation7 [shape = 'u8[32768]{0}', space=vmem, size = 0x8000, scoped, tag = 'input window, operand 2, single buffered']
    #allocation8 [shape = 'u8[16384]{0}', space=vmem, size = 0x4000, scoped, tag = 'input window, operand 3, single buffered']
    #allocation9 [shape = 's32[1]{0}', space=sflag, size = 0x4, scoped, tag = 'scoped memory for tpu_custom_call.1']
    #allocation10 [shape = 'u8[4096]{0}', space=vmem, size = 0x1000, scoped, tag = 'output window, operand 0, single buffered']
    #allocation11 [shape = 'u8[4096]{0}', space=vmem, size = 0x1000, scoped, tag = 'output window, operand 1, single buffered']
    #allocation12 [shape = 's32[1]{0}', space=sflag, size = 0x4, scoped, tag = 'scoped memory for tpu_custom_call.1']
    #allocation13 [shape = 'u8[4096]{0}', space=vmem, size = 0x1000, scoped, tag = 'output window, operand 2, single buffered']
    %12 = vsyncpa [#allocation3], 0
    %13 = vsyncpa [#allocation6], 0
    %14 = vsyncpa [#allocation9], 0
    %15 = vsyncpa [#allocation4], 0
    %16 = vsyncpa [#allocation12], 0
    // Predicated region
    $region2: #{tpu_custom_call.1} parent=1 // pred_check
      _
    $region3: #{tpu_custom_call.1} parent=1 // pred_check_branch
      %18 = sbr.rel (0) target = $region5
    $region4: #{tpu_custom_call.1} parent=1 // pred_region
      %20 = vsyncadd [#allocation3], 0
      %s22 = sshll.u32 %s0, 4
      %s23 = int_to_ptr.hbm [resolvable:$true] %s22
      %s24 = sshll.u32 [#allocation2], 4
      %s25 = int_to_ptr.vmem [resolvable:$true] %s24
      %27 = dma.hbm_to_vmem [thread:$0]  %s23, 128, %s25, [#allocation3]
    $region5: #{tpu_custom_call.1} parent=1 // pred_fallthru
      _
    // Predicated region
    $region6: #{tpu_custom_call.1} parent=1 // pred_check
      _
    $region7: #{tpu_custom_call.1} parent=1 // pred_check_branch
      %29 = sbr.rel (0) target = $region9
    $region8: #{tpu_custom_call.1} parent=1 // pred_region
      %31 = vsyncadd [#allocation6], 0
      %s33 = sshll.u32 %s1, 4
      %s34 = int_to_ptr.hbm [resolvable:$true] %s33
      %s35 = sshll.u32 [#allocation5], 4
      %s36 = int_to_ptr.vmem [resolvable:$true] %s35
      %38 = dma.hbm_to_vmem [thread:$0]  %s34, 16, %s36, [#allocation6]
    $region9: #{tpu_custom_call.1} parent=1 // pred_fallthru
      _
    // Predicated region
    $region10: #{tpu_custom_call.1} parent=1 // pred_check
      _
    $region11: #{tpu_custom_call.1} parent=1 // pred_check_branch
      %40 = sbr.rel (0) target = $region13
    $region12: #{tpu_custom_call.1} parent=1 // pred_region
      %42 = vsyncadd [#allocation6], 0
      %s43 = sshll.u32 %s2, 4
      %s44 = int_to_ptr.hbm [resolvable:$true] %s43
      %s45 = sshll.u32 [#allocation7], 4
      %s46 = int_to_ptr.vmem [resolvable:$true] %s45
      %51 = dma.hbm_to_vmem [thread:$0]  %s44, 1024, %s46, [#allocation6], 128, 128, 8
    $region13: #{tpu_custom_call.1} parent=1 // pred_fallthru
      _
    // Predicated region
    $region14: #{tpu_custom_call.1} parent=1 // pred_check
      _
    $region15: #{tpu_custom_call.1} parent=1 // pred_check_branch
      %53 = sbr.rel (0) target = $region17
    $region16: #{tpu_custom_call.1} parent=1 // pred_region
      %55 = vsyncadd [#allocation9], 0
      %s56 = sshll.u32 %s3, 4
      %s57 = int_to_ptr.hbm [resolvable:$true] %s56
      %s58 = sshll.u32 [#allocation8], 4
      %s59 = int_to_ptr.vmem [resolvable:$true] %s58
      %64 = dma.hbm_to_vmem [thread:$0]  %s57, 512, %s59, [#allocation9], 128, 128, 8
    $region17: #{tpu_custom_call.1} parent=1 // pred_fallthru
      _
    // Predicated region
    $region18: #{tpu_custom_call.1} parent=1 // pred_check
      _
    $region19: #{tpu_custom_call.1} parent=1 // pred_check_branch
      %66 = sbr.rel (0) target = $region21
    $region20: #{tpu_custom_call.1} parent=1 // pred_region
      %68 = dma.done [#allocation3], 128
    $region21: #{tpu_custom_call.1} parent=1 // pred_fallthru
      _
    // Predicated region
    $region22: #{tpu_custom_call.1} parent=1 // pred_check
      _
    $region23: #{tpu_custom_call.1} parent=1 // pred_check_branch
      %70 = sbr.rel (0) target = $region25
    $region24: #{tpu_custom_call.1} parent=1 // pred_region
      %72 = dma.done [#allocation6], 16
    $region25: #{tpu_custom_call.1} parent=1 // pred_fallthru
      _
    // Predicated region
    $region26: #{tpu_custom_call.1} parent=1 // pred_check
      _
    $region27: #{tpu_custom_call.1} parent=1 // pred_check_branch
      %74 = sbr.rel (0) target = $region29
    $region28: #{tpu_custom_call.1} parent=1 // pred_region
      %76 = dma.done [#allocation6], 1024
    $region29: #{tpu_custom_call.1} parent=1 // pred_fallthru
      _
    // Predicated region
    $region30: #{tpu_custom_call.1} parent=1 // pred_check
      _
    $region31: #{tpu_custom_call.1} parent=1 // pred_check_branch
      %78 = sbr.rel (0) target = $region33
    $region32: #{tpu_custom_call.1} parent=1 // pred_region
      %80 = dma.done [#allocation9], 512
    $region33: #{tpu_custom_call.1} parent=1 // pred_fallthru
      _
    %v81 = vld [vmem:[#allocation7] sm:$0xff]
    %v82 = vld [vmem:[#allocation7 + $0x8] sm:$0xff]
    %v83 = vld [vmem:[#allocation7 + $0x10] sm:$0xff]
    %v84 = vld [vmem:[#allocation7 + $0x18] sm:$0xff]
    %v85 = vld [vmem:[#allocation7 + $0x20] sm:$0xff]
    %v86 = vld [vmem:[#allocation7 + $0x28] sm:$0xff]
    %v87 = vld [vmem:[#allocation7 + $0x30] sm:$0xff]
    %v88 = vld [vmem:[#allocation7 + $0x38] sm:$0xff]
    %v89 = vld [vmem:[#allocation8] sm:$0xff]
    %v90 = vld [vmem:[#allocation8 + $0x8] sm:$0xff]
    %v91 = vld [vmem:[#allocation8 + $0x10] sm:$0xff]
    %v92 = vld [vmem:[#allocation8 + $0x18] sm:$0xff]
    %v93 = vperm.slane %v81, 0
    %v94 = vlaneseq
    %v95 = vshrl.u32 %v94, 7
    %97 = vset.pattern.permute.xlu0 %v95
    %98 = vperm.xlu0 %97, %v93
    %v99 = vpop.permute.xlu0 %98
    %v100 = vlaneseq
    %v101 = vshrl.u32 %v100, 7
    %v102 = vadd.s32 %v101, 8
    %103 = vset.pattern.permute.xlu0 %v102
    %104 = vperm.xlu0 %103, %v93
    %v105 = vpop.permute.xlu0 %104
    %v106 = vlaneseq
    %v107 = vshrl.u32 %v106, 7
    %v108 = vadd.s32 %v107, 16
    %109 = vset.pattern.permute.xlu0 %v108
    %110 = vperm.xlu0 %109, %v93
    %v111 = vpop.permute.xlu0 %110
    %v112 = vlaneseq
    %v113 = vshrl.u32 %v112, 7
    %v114 = vadd.s32 %v113, 24
    %115 = vset.pattern.permute.xlu0 %v114
    %116 = vperm.xlu0 %115, %v93
    %v117 = vpop.permute.xlu0 %116
    %v118 = vperm.slane %v82, 0
    %v119 = vlaneseq
    %v120 = vshrl.u32 %v119, 7
    %122 = vset.pattern.permute.xlu0 %v120
    %123 = vperm.xlu0 %122, %v118
    %v124 = vpop.permute.xlu0 %123
    %v125 = vlaneseq
    %v126 = vshrl.u32 %v125, 7
    %v127 = vadd.s32 %v126, 8
    %128 = vset.pattern.permute.xlu0 %v127
    %129 = vperm.xlu0 %128, %v118
    %v130 = vpop.permute.xlu0 %129
    %v131 = vlaneseq
    %v132 = vshrl.u32 %v131, 7
    %v133 = vadd.s32 %v132, 16
    %134 = vset.pattern.permute.xlu0 %v133
    %135 = vperm.xlu0 %134, %v118
    %v136 = vpop.permute.xlu0 %135
    %v137 = vlaneseq
    %v138 = vshrl.u32 %v137, 7
    %v139 = vadd.s32 %v138, 24
    %140 = vset.pattern.permute.xlu0 %v139
    %141 = vperm.xlu0 %140, %v118
    %v142 = vpop.permute.xlu0 %141
    %v143 = vperm.slane %v83, 0
    %v144 = vlaneseq
    %v145 = vshrl.u32 %v144, 7
    %147 = vset.pattern.permute.xlu0 %v145
    %148 = vperm.xlu0 %147, %v143
    %v149 = vpop.permute.xlu0 %148
    %v150 = vlaneseq
    %v151 = vshrl.u32 %v150, 7
    %v152 = vadd.s32 %v151, 8
    %153 = vset.pattern.permute.xlu0 %v152
    %154 = vperm.xlu0 %153, %v143
    %v155 = vpop.permute.xlu0 %154
    %v156 = vlaneseq
    %v157 = vshrl.u32 %v156, 7
    %v158 = vadd.s32 %v157, 16
    %159 = vset.pattern.permute.xlu0 %v158
    %160 = vperm.xlu0 %159, %v143
    %v161 = vpop.permute.xlu0 %160
    %v162 = vlaneseq
    %v163 = vshrl.u32 %v162, 7
    %v164 = vadd.s32 %v163, 24
    %165 = vset.pattern.permute.xlu0 %v164
    %166 = vperm.xlu0 %165, %v143
    %v167 = vpop.permute.xlu0 %166
    %v168 = vperm.slane %v84, 0
    %v169 = vlaneseq
    %v170 = vshrl.u32 %v169, 7
    %172 = vset.pattern.permute.xlu0 %v170
    %173 = vperm.xlu0 %172, %v168
    %v174 = vpop.permute.xlu0 %173
    %v175 = vlaneseq
    %v176 = vshrl.u32 %v175, 7
    %v177 = vadd.s32 %v176, 8
    %178 = vset.pattern.permute.xlu0 %v177
    %179 = vperm.xlu0 %178, %v168
    %v180 = vpop.permute.xlu0 %179
    %v181 = vlaneseq
    %v182 = vshrl.u32 %v181, 7
    %v183 = vadd.s32 %v182, 16
    %184 = vset.pattern.permute.xlu0 %v183
    %185 = vperm.xlu0 %184, %v168
    %v186 = vpop.permute.xlu0 %185
    %v187 = vlaneseq
    %v188 = vshrl.u32 %v187, 7
    %v189 = vadd.s32 %v188, 24
    %190 = vset.pattern.permute.xlu0 %v189
    %191 = vperm.xlu0 %190, %v168
    %v192 = vpop.permute.xlu0 %191
    %v193 = vperm.slane %v85, 0
    %v194 = vlaneseq
    %v195 = vshrl.u32 %v194, 7
    %197 = vset.pattern.permute.xlu0 %v195
    %198 = vperm.xlu0 %197, %v193
    %v199 = vpop.permute.xlu0 %198
    %v200 = vlaneseq
    %v201 = vshrl.u32 %v200, 7
    %v202 = vadd.s32 %v201, 8
    %203 = vset.pattern.permute.xlu0 %v202
    %204 = vperm.xlu0 %203, %v193
    %v205 = vpop.permute.xlu0 %204
    %v206 = vlaneseq
    %v207 = vshrl.u32 %v206, 7
    %v208 = vadd.s32 %v207, 16
    %209 = vset.pattern.permute.xlu0 %v208
    %210 = vperm.xlu0 %209, %v193
    %v211 = vpop.permute.xlu0 %210
    %v212 = vlaneseq
    %v213 = vshrl.u32 %v212, 7
    %v214 = vadd.s32 %v213, 24
    %215 = vset.pattern.permute.xlu0 %v214
    %216 = vperm.xlu0 %215, %v193
    %v217 = vpop.permute.xlu0 %216
    %v218 = vperm.slane %v86, 0
    %v219 = vlaneseq
    %v220 = vshrl.u32 %v219, 7
    %222 = vset.pattern.permute.xlu0 %v220
    %223 = vperm.xlu0 %222, %v218
    %v224 = vpop.permute.xlu0 %223
    %v225 = vlaneseq
    %v226 = vshrl.u32 %v225, 7
    %v227 = vadd.s32 %v226, 8
    %228 = vset.pattern.permute.xlu0 %v227
    %229 = vperm.xlu0 %228, %v218
    %v230 = vpop.permute.xlu0 %229
    %v231 = vlaneseq
    %v232 = vshrl.u32 %v231, 7
    %v233 = vadd.s32 %v232, 16
    %234 = vset.pattern.permute.xlu0 %v233
    %235 = vperm.xlu0 %234, %v218
    %v236 = vpop.permute.xlu0 %235
    %v237 = vlaneseq
    %v238 = vshrl.u32 %v237, 7
    %v239 = vadd.s32 %v238, 24
    %240 = vset.pattern.permute.xlu0 %v239
    %241 = vperm.xlu0 %240, %v218
    %v242 = vpop.permute.xlu0 %241
    %v243 = vperm.slane %v87, 0
    %v244 = vlaneseq
    %v245 = vshrl.u32 %v244, 7
    %247 = vset.pattern.permute.xlu0 %v245
    %248 = vperm.xlu0 %247, %v243
    %v249 = vpop.permute.xlu0 %248
    %v250 = vlaneseq
    %v251 = vshrl.u32 %v250, 7
    %v252 = vadd.s32 %v251, 8
    %253 = vset.pattern.permute.xlu0 %v252
    %254 = vperm.xlu0 %253, %v243
    %v255 = vpop.permute.xlu0 %254
    %v256 = vlaneseq
    %v257 = vshrl.u32 %v256, 7
    %v258 = vadd.s32 %v257, 16
    %259 = vset.pattern.permute.xlu0 %v258
    %260 = vperm.xlu0 %259, %v243
    %v261 = vpop.permute.xlu0 %260
    %v262 = vlaneseq
    %v263 = vshrl.u32 %v262, 7
    %v264 = vadd.s32 %v263, 24
    %265 = vset.pattern.permute.xlu0 %v264
    %266 = vperm.xlu0 %265, %v243
    %v267 = vpop.permute.xlu0 %266
    %v268 = vperm.slane %v88, 0
    %v269 = vlaneseq
    %v270 = vshrl.u32 %v269, 7
    %272 = vset.pattern.permute.xlu0 %v270
    %273 = vperm.xlu0 %272, %v268
    %v274 = vpop.permute.xlu0 %273
    %v275 = vlaneseq
    %v276 = vshrl.u32 %v275, 7
    %v277 = vadd.s32 %v276, 8
    %278 = vset.pattern.permute.xlu0 %v277
    %279 = vperm.xlu0 %278, %v268
    %v280 = vpop.permute.xlu0 %279
    %v281 = vlaneseq
    %v282 = vshrl.u32 %v281, 7
    %v283 = vadd.s32 %v282, 16
    %284 = vset.pattern.permute.xlu0 %v283
    %285 = vperm.xlu0 %284, %v268
    %v286 = vpop.permute.xlu0 %285
    %v287 = vlaneseq
    %v288 = vshrl.u32 %v287, 7
    %v289 = vadd.s32 %v288, 24
    %290 = vset.pattern.permute.xlu0 %v289
    %291 = vperm.xlu0 %290, %v268
    %v292 = vpop.permute.xlu0 %291
    %v293 = vsub.f32 %v89, %v99
    %v294 = vsub.f32 %v90, %v105
    %v295 = vsub.f32 %v91, %v111
    %v296 = vsub.f32 %v92, %v117
    %v297 = vsub.f32 %v89, %v124
    %v298 = vsub.f32 %v90, %v130
    %v299 = vsub.f32 %v91, %v136
    %v300 = vsub.f32 %v92, %v142
    %v301 = vsub.f32 %v89, %v149
    %v302 = vsub.f32 %v90, %v155
    %v303 = vsub.f32 %v91, %v161
    %v304 = vsub.f32 %v92, %v167
    %v305 = vsub.f32 %v89, %v174
    %v306 = vsub.f32 %v90, %v180
    %v307 = vsub.f32 %v91, %v186
    %v308 = vsub.f32 %v92, %v192
    %v309 = vsub.f32 %v89, %v199
    %v310 = vsub.f32 %v90, %v205
    %v311 = vsub.f32 %v91, %v211
    %v312 = vsub.f32 %v92, %v217
    %v313 = vsub.f32 %v89, %v224
    %v314 = vsub.f32 %v90, %v230
    %v315 = vsub.f32 %v91, %v236
    %v316 = vsub.f32 %v92, %v242
    %v317 = vsub.f32 %v89, %v249
    %v318 = vsub.f32 %v90, %v255
    %v319 = vsub.f32 %v91, %v261
    %v320 = vsub.f32 %v92, %v267
    %v321 = vsub.f32 %v89, %v274
    %v322 = vsub.f32 %v90, %v280
    %v323 = vsub.f32 %v91, %v286
    %v324 = vsub.f32 %v92, %v292
    %v325 = vmul.f32 %v293, %v293
    %v326 = vmul.f32 %v294, %v294
    %v327 = vmul.f32 %v295, %v295
    %v328 = vmul.f32 %v296, %v296
    %v329 = vmul.f32 %v297, %v297
    %v330 = vmul.f32 %v298, %v298
    %v331 = vmul.f32 %v299, %v299
    %v332 = vmul.f32 %v300, %v300
    %v333 = vmul.f32 %v301, %v301
    %v334 = vmul.f32 %v302, %v302
    %v335 = vmul.f32 %v303, %v303
    %v336 = vmul.f32 %v304, %v304
    %v337 = vmul.f32 %v305, %v305
    %v338 = vmul.f32 %v306, %v306
    %v339 = vmul.f32 %v307, %v307
    %v340 = vmul.f32 %v308, %v308
    %v341 = vmul.f32 %v309, %v309
    %v342 = vmul.f32 %v310, %v310
    %v343 = vmul.f32 %v311, %v311
    %v344 = vmul.f32 %v312, %v312
    %v345 = vmul.f32 %v313, %v313
    %v346 = vmul.f32 %v314, %v314
    %v347 = vmul.f32 %v315, %v315
    %v348 = vmul.f32 %v316, %v316
    %v349 = vmul.f32 %v317, %v317
    %v350 = vmul.f32 %v318, %v318
    %v351 = vmul.f32 %v319, %v319
    %v352 = vmul.f32 %v320, %v320
    %v353 = vmul.f32 %v321, %v321
    %v354 = vmul.f32 %v322, %v322
    %v355 = vmul.f32 %v323, %v323
    %v356 = vmul.f32 %v324, %v324
    %v357 = vadd.f32 %v325, %v326
    %v358 = vadd.f32 %v357, %v327
    %v359 = vadd.f32 %v358, %v328
    %v360 = vrot.slane %v359, 4
    %v361 = vadd.f32 %v359, %v360
    %v362 = vrot.slane %v361, 2
    %v363 = vadd.f32 %v361, %v362
    %v364 = vrot.slane %v363, 1
    %v365 = vadd.f32 %v363, %v364
    %v366 = vadd.f32 %v329, %v330
    %v367 = vadd.f32 %v366, %v331
    %v368 = vadd.f32 %v367, %v332
    %v369 = vrot.slane %v368, 4
    %v370 = vadd.f32 %v368, %v369
    %v371 = vrot.slane %v370, 2
    %v372 = vadd.f32 %v370, %v371
    %v373 = vrot.slane %v372, 1
    %v374 = vadd.f32 %v372, %v373
    %v375 = vadd.f32 %v333, %v334
    %v376 = vadd.f32 %v375, %v335
    %v377 = vadd.f32 %v376, %v336
    %v378 = vrot.slane %v377, 4
    %v379 = vadd.f32 %v377, %v378
    %v380 = vrot.slane %v379, 2
    %v381 = vadd.f32 %v379, %v380
    %v382 = vrot.slane %v381, 1
    %v383 = vadd.f32 %v381, %v382
    %v384 = vadd.f32 %v337, %v338
    %v385 = vadd.f32 %v384, %v339
    %v386 = vadd.f32 %v385, %v340
    %v387 = vrot.slane %v386, 4
    %v388 = vadd.f32 %v386, %v387
    %v389 = vrot.slane %v388, 2
    %v390 = vadd.f32 %v388, %v389
    %v391 = vrot.slane %v390, 1
    %v392 = vadd.f32 %v390, %v391
    %v393 = vadd.f32 %v341, %v342
    %v394 = vadd.f32 %v393, %v343
    %v395 = vadd.f32 %v394, %v344
    %v396 = vrot.slane %v395, 4
    %v397 = vadd.f32 %v395, %v396
    %v398 = vrot.slane %v397, 2
    %v399 = vadd.f32 %v397, %v398
    %v400 = vrot.slane %v399, 1
    %v401 = vadd.f32 %v399, %v400
    %v402 = vadd.f32 %v345, %v346
    %v403 = vadd.f32 %v402, %v347
    %v404 = vadd.f32 %v403, %v348
    %v405 = vrot.slane %v404, 4
    %v406 = vadd.f32 %v404, %v405
    %v407 = vrot.slane %v406, 2
    %v408 = vadd.f32 %v406, %v407
    %v409 = vrot.slane %v408, 1
    %v410 = vadd.f32 %v408, %v409
    %v411 = vadd.f32 %v349, %v350
    %v412 = vadd.f32 %v411, %v351
    %v413 = vadd.f32 %v412, %v352
    %v414 = vrot.slane %v413, 4
    %v415 = vadd.f32 %v413, %v414
    %v416 = vrot.slane %v415, 2
    %v417 = vadd.f32 %v415, %v416
    %v418 = vrot.slane %v417, 1
    %v419 = vadd.f32 %v417, %v418
    %v420 = vadd.f32 %v353, %v354
    %v421 = vadd.f32 %v420, %v355
    %v422 = vadd.f32 %v421, %v356
    %v423 = vrot.slane %v422, 4
    %v424 = vadd.f32 %v422, %v423
    %v425 = vrot.slane %v424, 2
    %v426 = vadd.f32 %v424, %v425
    %v427 = vrot.slane %v426, 1
    %v428 = vadd.f32 %v426, %v427
    %vm437 = vcmask 1041409
    %v438 = vsel %vm437, %v374, %v365
    %vm439 = vcmask 1042434
    %v440 = vsel %vm439, %v383, %v438
    %vm441 = vcmask 1043459
    %v442 = vsel %vm441, %v392, %v440
    %vm443 = vcmask 1044484
    %v444 = vsel %vm443, %v401, %v442
    %vm445 = vcmask 1045509
    %v446 = vsel %vm445, %v410, %v444
    %vm447 = vcmask 1046534
    %v448 = vsel %vm447, %v419, %v446
    %vm449 = vcmask 1047559
    %v450 = vsel %vm449, %v428, %v448
    %452 = vst [vmem:[#allocation10] sm:$0xff] %v450
    %v453 = vsub.f32 %v81, %v93
    %v454 = vsub.f32 %v82, %v118
    %v455 = vsub.f32 %v83, %v143
    %v456 = vsub.f32 %v84, %v168
    %v457 = vsub.f32 %v85, %v193
    %v458 = vsub.f32 %v86, %v218
    %v459 = vsub.f32 %v87, %v243
    %v460 = vsub.f32 %v88, %v268
    %v461 = vmul.f32 %v453, %v453
    %v462 = vmul.f32 %v454, %v454
    %v463 = vmul.f32 %v455, %v455
    %v464 = vmul.f32 %v456, %v456
    %v465 = vmul.f32 %v457, %v457
    %v466 = vmul.f32 %v458, %v458
    %v467 = vmul.f32 %v459, %v459
    %v468 = vmul.f32 %v460, %v460
    %vm469 = vcmask 261120
    %v470 = vsel %vm469, %v461, 0.0
    %471 = vadd.xlane.f32.xlu0 %v470
    %v472 = vpop.xlane.xlu0 %471
    %v473 = vsel %vm469, %v462, 0.0
    %474 = vadd.xlane.f32.xlu0 %v473
    %v475 = vpop.xlane.xlu0 %474
    %v476 = vsel %vm469, %v463, 0.0
    %477 = vadd.xlane.f32.xlu0 %v476
    %v478 = vpop.xlane.xlu0 %477
    %v479 = vsel %vm469, %v464, 0.0
    %480 = vadd.xlane.f32.xlu0 %v479
    %v481 = vpop.xlane.xlu0 %480
    %v482 = vsel %vm469, %v465, 0.0
    %483 = vadd.xlane.f32.xlu0 %v482
    %v484 = vpop.xlane.xlu0 %483
    %v485 = vsel %vm469, %v466, 0.0
    %486 = vadd.xlane.f32.xlu0 %v485
    %v487 = vpop.xlane.xlu0 %486
    %v488 = vsel %vm469, %v467, 0.0
    %489 = vadd.xlane.f32.xlu0 %v488
    %v490 = vpop.xlane.xlu0 %489
    %v491 = vsel %vm469, %v468, 0.0
    %492 = vadd.xlane.f32.xlu0 %v491
    %v493 = vpop.xlane.xlu0 %492
    %v494 = vld [vmem:[#allocation2] sm:$0xff]
    %vm495 = vcmp.eq.f32.partialorder %v494, 1.0
    %v496 = vsel %vm495, 1.0, 0.0
    %v497 = vlaneseq
    %v498 = vand.u32 %v497, 127
    %v499 = vlaneseq
    %v500 = vshrl.u32 %v499, 7
    %s501 = smul.u32 0, 8
    %v502 = vstv %s501
    %v503 = vadd.s32 %v502, %v500
    %v504 = vmul.u32 %v503, 8
    %vm505 = vcmp.ge.s32.totalorder %v498, %v504
    %v506 = vadd.s32 %v504, 8
    %vm507 = vcmp.lt.s32.totalorder %v498, %v506
    %vm508 = vmand %vm505, %vm507
    %v509 = vld [vmem:[#allocation5] sm:$0x1]
    %vm510 = vcmp.eq.f32.partialorder %v509, 1.0
    %v511 = vsel %vm510, 1, 0
    %v512 = vperm.slane %v511, 0
    %vm513 = vcmp.eq.s32.totalorder %v512, 1
    %vm514 = vmand %vm508, %vm513
    %vm515 = vcmp.lt.s32.totalorder %v498, 16
    %vm516 = vcmp.ne.s32.totalorder %v498, %v504
    %vm517 = vmand %vm515, %vm516
    %vm518 = vmxor %vm514, 1
    %vm519 = vmand %vm517, %vm518
    %v520 = vsel %vm519, 1.0, 0.0
    %v521 = vsub.f32 %v472, %v365
    %v522 = vsub.f32 %v475, %v374
    %v523 = vsub.f32 %v478, %v383
    %v524 = vsub.f32 %v481, %v392
    %v525 = vsub.f32 %v484, %v401
    %v526 = vsub.f32 %v487, %v410
    %v527 = vsub.f32 %v490, %v419
    %v528 = vsub.f32 %v493, %v428
    %v529 = vadd.f32 %v521, 0.5
    %v530 = vadd.f32 %v522, 0.5
    %v531 = vadd.f32 %v523, 0.5
    %v532 = vadd.f32 %v524, 0.5
    %v533 = vadd.f32 %v525, 0.5
    %v534 = vadd.f32 %v526, 0.5
    %v535 = vadd.f32 %v527, 0.5
    %v536 = vadd.f32 %v528, 0.5
    %v537 = vperm.slane %v496, 0
    %v538 = vlaneseq
    %v539 = vshrl.u32 %v538, 7
    %541 = vset.pattern.permute.xlu0 %v539
    %542 = vperm.xlu0 %541, %v537
    %v543 = vpop.permute.xlu0 %542
    %v544 = vperm.slane %v496, 1
    %v545 = vlaneseq
    %v546 = vshrl.u32 %v545, 7
    %548 = vset.pattern.permute.xlu0 %v546
    %549 = vperm.xlu0 %548, %v544
    %v550 = vpop.permute.xlu0 %549
    %v551 = vperm.slane %v496, 2
    %v552 = vlaneseq
    %v553 = vshrl.u32 %v552, 7
    %555 = vset.pattern.permute.xlu0 %v553
    %556 = vperm.xlu0 %555, %v551
    %v557 = vpop.permute.xlu0 %556
    %v558 = vperm.slane %v496, 3
    %v559 = vlaneseq
    %v560 = vshrl.u32 %v559, 7
    %562 = vset.pattern.permute.xlu0 %v560
    %563 = vperm.xlu0 %562, %v558
    %v564 = vpop.permute.xlu0 %563
    %v565 = vperm.slane %v496, 4
    %v566 = vlaneseq
    %v567 = vshrl.u32 %v566, 7
    %569 = vset.pattern.permute.xlu0 %v567
    %570 = vperm.xlu0 %569, %v565
    %v571 = vpop.permute.xlu0 %570
    %v572 = vperm.slane %v496, 5
    %v573 = vlaneseq
    %v574 = vshrl.u32 %v573, 7
    %576 = vset.pattern.permute.xlu0 %v574
    %577 = vperm.xlu0 %576, %v572
    %v578 = vpop.permute.xlu0 %577
    %v579 = vperm.slane %v496, 6
    %v580 = vlaneseq
    %v581 = vshrl.u32 %v580, 7
    %583 = vset.pattern.permute.xlu0 %v581
    %584 = vperm.xlu0 %583, %v579
    %v585 = vpop.permute.xlu0 %584
    %v586 = vperm.slane %v496, 7
    %v587 = vlaneseq
    %v588 = vshrl.u32 %v587, 7
    %590 = vset.pattern.permute.xlu0 %v588
    %591 = vperm.xlu0 %590, %v586
    %v592 = vpop.permute.xlu0 %591
    %v594 = vrot.slane %v520, 1
    %v595 = vrot.slane %v520, 2
    %v596 = vrot.slane %v520, 3
    %v597 = vrot.slane %v520, 4
    %v598 = vrot.slane %v520, 5
    %v599 = vrot.slane %v520, 6
    %v600 = vrot.slane %v520, 7
    %v601 = vperm.slane %v520, 0
    %v602 = vperm.slane %v594, 0
    %v603 = vperm.slane %v595, 0
    %v604 = vperm.slane %v596, 0
    %v605 = vperm.slane %v597, 0
    %v606 = vperm.slane %v598, 0
    %v607 = vperm.slane %v599, 0
    %v608 = vperm.slane %v600, 0
    %v617 = vmul.f32 %v543, %v601
    %v618 = vmul.f32 %v550, %v602
    %v619 = vmul.f32 %v557, %v603
    %v620 = vmul.f32 %v564, %v604
    %v621 = vmul.f32 %v571, %v605
    %v622 = vmul.f32 %v578, %v606
    %v623 = vmul.f32 %v585, %v607
    %v624 = vmul.f32 %v592, %v608
    %v625 = vmax.f32 %v529, 0.0
    %v626 = vmax.f32 %v530, 0.0
    %v627 = vmax.f32 %v531, 0.0
    %v628 = vmax.f32 %v532, 0.0
    %v629 = vmax.f32 %v533, 0.0
    %v630 = vmax.f32 %v534, 0.0
    %v631 = vmax.f32 %v535, 0.0
    %v632 = vmax.f32 %v536, 0.0
    %v633 = vmul.f32 %v617, %v625
    %v634 = vmul.f32 %v618, %v626
    %v635 = vmul.f32 %v619, %v627
    %v636 = vmul.f32 %v620, %v628
    %v637 = vmul.f32 %v621, %v629
    %v638 = vmul.f32 %v622, %v630
    %v639 = vmul.f32 %v623, %v631
    %v640 = vmul.f32 %v624, %v632
    %v641 = vrot.slane %v633, 4
    %v642 = vadd.f32 %v633, %v641
    %v643 = vrot.slane %v642, 2
    %v644 = vadd.f32 %v642, %v643
    %v645 = vrot.slane %v644, 1
    %v646 = vadd.f32 %v644, %v645
    %v647 = vrot.slane %v634, 4
    %v648 = vadd.f32 %v634, %v647
    %v649 = vrot.slane %v648, 2
    %v650 = vadd.f32 %v648, %v649
    %v651 = vrot.slane %v650, 1
    %v652 = vadd.f32 %v650, %v651
    %v653 = vrot.slane %v635, 4
    %v654 = vadd.f32 %v635, %v653
    %v655 = vrot.slane %v654, 2
    %v656 = vadd.f32 %v654, %v655
    %v657 = vrot.slane %v656, 1
    %v658 = vadd.f32 %v656, %v657
    %v659 = vrot.slane %v636, 4
    %v660 = vadd.f32 %v636, %v659
    %v661 = vrot.slane %v660, 2
    %v662 = vadd.f32 %v660, %v661
    %v663 = vrot.slane %v662, 1
    %v664 = vadd.f32 %v662, %v663
    %v665 = vrot.slane %v637, 4
    %v666 = vadd.f32 %v637, %v665
    %v667 = vrot.slane %v666, 2
    %v668 = vadd.f32 %v666, %v667
    %v669 = vrot.slane %v668, 1
    %v670 = vadd.f32 %v668, %v669
    %v671 = vrot.slane %v638, 4
    %v672 = vadd.f32 %v638, %v671
    %v673 = vrot.slane %v672, 2
    %v674 = vadd.f32 %v672, %v673
    %v675 = vrot.slane %v674, 1
    %v676 = vadd.f32 %v674, %v675
    %v677 = vrot.slane %v639, 4
    %v678 = vadd.f32 %v639, %v677
    %v679 = vrot.slane %v678, 2
    %v680 = vadd.f32 %v678, %v679
    %v681 = vrot.slane %v680, 1
    %v682 = vadd.f32 %v680, %v681
    %v683 = vrot.slane %v640, 4
    %v684 = vadd.f32 %v640, %v683
    %v685 = vrot.slane %v684, 2
    %v686 = vadd.f32 %v684, %v685
    %v687 = vrot.slane %v686, 1
    %v688 = vadd.f32 %v686, %v687
    %v697 = vsel %vm437, %v652, %v646
    %v698 = vsel %vm439, %v658, %v697
    %v699 = vsel %vm441, %v664, %v698
    %v700 = vsel %vm443, %v670, %v699
    %v701 = vsel %vm445, %v676, %v700
    %v702 = vsel %vm447, %v682, %v701
    %v703 = vsel %vm449, %v688, %v702
    %705 = vst [vmem:[#allocation11] sm:$0xff] %v703
    %vm706 = vcmp.gt.f32.partialorder %v633, 1e-16
    %vm707 = vcmp.gt.f32.partialorder %v634, 1e-16
    %vm708 = vcmp.gt.f32.partialorder %v635, 1e-16
    %vm709 = vcmp.gt.f32.partialorder %v636, 1e-16
    %vm710 = vcmp.gt.f32.partialorder %v637, 1e-16
    %vm711 = vcmp.gt.f32.partialorder %v638, 1e-16
    %vm712 = vcmp.gt.f32.partialorder %v639, 1e-16
    %vm713 = vcmp.gt.f32.partialorder %v640, 1e-16
    %v714 = vsel %vm706, 1, 0
    %v715 = vsel %vm707, 1, 0
    %v716 = vsel %vm708, 1, 0
    %v717 = vsel %vm709, 1, 0
    %v718 = vsel %vm710, 1, 0
    %v719 = vsel %vm711, 1, 0
    %v720 = vsel %vm712, 1, 0
    %v721 = vsel %vm713, 1, 0
    %v722 = vcvt.s32.f32 %v714
    %v723 = vcvt.s32.f32 %v715
    %v724 = vcvt.s32.f32 %v716
    %v725 = vcvt.s32.f32 %v717
    %v726 = vcvt.s32.f32 %v718
    %v727 = vcvt.s32.f32 %v719
    %v728 = vcvt.s32.f32 %v720
    %v729 = vcvt.s32.f32 %v721
    %v730 = vrot.slane %v722, 4
    %v731 = vadd.f32 %v722, %v730
    %v732 = vrot.slane %v731, 2
    %v733 = vadd.f32 %v731, %v732
    %v734 = vrot.slane %v733, 1
    %v735 = vadd.f32 %v733, %v734
    %v736 = vrot.slane %v723, 4
    %v737 = vadd.f32 %v723, %v736
    %v738 = vrot.slane %v737, 2
    %v739 = vadd.f32 %v737, %v738
    %v740 = vrot.slane %v739, 1
    %v741 = vadd.f32 %v739, %v740
    %v742 = vrot.slane %v724, 4
    %v743 = vadd.f32 %v724, %v742
    %v744 = vrot.slane %v743, 2
    %v745 = vadd.f32 %v743, %v744
    %v746 = vrot.slane %v745, 1
    %v747 = vadd.f32 %v745, %v746
    %v748 = vrot.slane %v725, 4
    %v749 = vadd.f32 %v725, %v748
    %v750 = vrot.slane %v749, 2
    %v751 = vadd.f32 %v749, %v750
    %v752 = vrot.slane %v751, 1
    %v753 = vadd.f32 %v751, %v752
    %v754 = vrot.slane %v726, 4
    %v755 = vadd.f32 %v726, %v754
    %v756 = vrot.slane %v755, 2
    %v757 = vadd.f32 %v755, %v756
    %v758 = vrot.slane %v757, 1
    %v759 = vadd.f32 %v757, %v758
    %v760 = vrot.slane %v727, 4
    %v761 = vadd.f32 %v727, %v760
    %v762 = vrot.slane %v761, 2
    %v763 = vadd.f32 %v761, %v762
    %v764 = vrot.slane %v763, 1
    %v765 = vadd.f32 %v763, %v764
    %v766 = vrot.slane %v728, 4
    %v767 = vadd.f32 %v728, %v766
    %v768 = vrot.slane %v767, 2
    %v769 = vadd.f32 %v767, %v768
    %v770 = vrot.slane %v769, 1
    %v771 = vadd.f32 %v769, %v770
    %v772 = vrot.slane %v729, 4
    %v773 = vadd.f32 %v729, %v772
    %v774 = vrot.slane %v773, 2
    %v775 = vadd.f32 %v773, %v774
    %v776 = vrot.slane %v775, 1
    %v777 = vadd.f32 %v775, %v776
    %v786 = vsel %vm437, %v741, %v735
    %v787 = vsel %vm439, %v747, %v786
    %v788 = vsel %vm441, %v753, %v787
    %v789 = vsel %vm443, %v759, %v788
    %v790 = vsel %vm445, %v765, %v789
    %v791 = vsel %vm447, %v771, %v790
    %v792 = vsel %vm449, %v777, %v791
    %794 = vst [vmem:[#allocation13] sm:$0xff] %v792
    // Predicated region
    $region34: #{tpu_custom_call.1} parent=1 // pred_check
      _
    $region35: #{tpu_custom_call.1} parent=1 // pred_check_branch
      %796 = sbr.rel (0) target = $region37
    $region36: #{tpu_custom_call.1} parent=1 // pred_region
      %798 = vsyncadd [#allocation4], 0
      %s800 = sshll.u32 [#allocation10], 4
      %s801 = int_to_ptr.vmem [resolvable:$true] %s800
      %s802 = sshll.u32 %s4, 4
      %s803 = int_to_ptr.hbm [resolvable:$true] %s802
      %805 = dma.vmem_to_hbm [thread:$0]  %s801, 128, %s803, [#allocation4]
    $region37: #{tpu_custom_call.1} parent=1 // pred_fallthru
      _
    // Predicated region
    $region38: #{tpu_custom_call.1} parent=1 // pred_check
      _
    $region39: #{tpu_custom_call.1} parent=1 // pred_check_branch
      %807 = sbr.rel (0) target = $region41
    $region40: #{tpu_custom_call.1} parent=1 // pred_region
      %809 = vsyncadd [#allocation12], 0
      %s811 = sshll.u32 [#allocation11], 4
      %s812 = int_to_ptr.vmem [resolvable:$true] %s811
      %s813 = sshll.u32 %s5, 4
      %s814 = int_to_ptr.hbm [resolvable:$true] %s813
      %816 = dma.vmem_to_hbm [thread:$0]  %s812, 128, %s814, [#allocation12]
    $region41: #{tpu_custom_call.1} parent=1 // pred_fallthru
      _
    // Predicated region
    $region42: #{tpu_custom_call.1} parent=1 // pred_check
      _
    $region43: #{tpu_custom_call.1} parent=1 // pred_check_branch
      %818 = sbr.rel (0) target = $region45
    $region44: #{tpu_custom_call.1} parent=1 // pred_region
      %820 = vsyncadd [#allocation12], 0
      %s822 = sshll.u32 [#allocation13], 4
      %s823 = int_to_ptr.vmem [resolvable:$true] %s822
      %s824 = sshll.u32 %s6, 4
      %s825 = int_to_ptr.hbm [resolvable:$true] %s824
      %827 = dma.vmem_to_hbm [thread:$0]  %s823, 128, %s825, [#allocation12]
    $region45: #{tpu_custom_call.1} parent=1 // pred_fallthru
      _
    // Predicated region
    $region46: #{tpu_custom_call.1} parent=1 // pred_check
      _
    $region47: #{tpu_custom_call.1} parent=1 // pred_check_branch
      %829 = sbr.rel (0) target = $region49
    $region48: #{tpu_custom_call.1} parent=1 // pred_region
      %831 = dma.done [#allocation4], 128
    $region49: #{tpu_custom_call.1} parent=1 // pred_fallthru
      _
    // Predicated region
    $region50: #{tpu_custom_call.1} parent=1 // pred_check
      _
    $region51: #{tpu_custom_call.1} parent=1 // pred_check_branch
      %833 = sbr.rel (0) target = $region53
    $region52: #{tpu_custom_call.1} parent=1 // pred_region
      %835 = dma.done [#allocation12], 128
    $region53: #{tpu_custom_call.1} parent=1 // pred_fallthru
      _
    // Predicated region
    $region54: #{tpu_custom_call.1} parent=1 // pred_check
      _
    $region55: #{tpu_custom_call.1} parent=1 // pred_check_branch
      %837 = sbr.rel (0) target = $region57
    $region56: #{tpu_custom_call.1} parent=1 // pred_region
      %839 = dma.done [#allocation12], 128
    $region57: #{tpu_custom_call.1} parent=1 // pred_fallthru
      _
    %840 = vsyncpa [#allocation3], 1
    %841 = vsyncpa [#allocation6], 1
    %842 = vsyncpa [#allocation9], 1
    %843 = vsyncpa [#allocation4], 1
    %844 = vsyncpa [#allocation12], 1

</llo_original>
